<compile_context>
chip_gen: v7x
topology: tpu7x:2x2x1
jax: 0.10.0
libtpu: 0.0.40
codegen_flags: <defaults>
</compile_context>

<pallas_src>
import functools

import jax
import jax.numpy as jnp
from jax.experimental import pallas as pl
from jax.experimental.pallas import tpu as pltpu


_VMEM = pl.BlockSpec(memory_space=pltpu.MemorySpace.VMEM)


# ---------------------------------------------------------------------------
# Shared compute: one full Policy_LSTMNetwork step (3 LSTM cells + head).
# ---------------------------------------------------------------------------
def _stacked_lstm_step(x, st_in, st_out, w_ref, b_ref, wo_ref, bo_ref):
    """One forward step.

    x      : (B, Din) loaded input activations.
    st_in  : ref (3, 2, B, H) holding [h, c] per layer (read).
    st_out : ref (3, 2, B, H) receiving the new [h, c] (written). May alias
             st_in (rollout carries state in one scratch buffer).
    w_ref  : ref (3, Wrows, 4H); per layer rows [0:din] = W_ih^T and rows
             [din:din+H] = W_hh^T; remaining rows are zero padding and are
             never read (slice bounds stay at din / din+H).
    b_ref  : ref (3, 1, 4H), pre-folded b_ih + b_hh.
    wo_ref : ref (H, O) = output.weight^T ; bo_ref : ref (1, O).

    Returns y = softmax(h2 @ Wo + bo, axis=1), shape (B, O).
    Gate order (i, f, g, o) matches torch.nn.LSTMCell.
    """
    H = st_in.shape[-1]
    inp = x
    for layer in range(3):
        din = inp.shape[1]
        h = st_in[layer, 0]
        c = st_in[layer, 1]
        w_l = w_ref[layer]  # (Wrows, 4H), VMEM-resident
        # Two MXU dots on sublane-aligned row slices of the stacked weight.
        # (A lane-concat of [inp, h] into a single dot would save one MXU
        #  push on v5e/v6e but needs a sub-128-lane concat; two aligned dots
        #  kept for lowering robustness — the kernel is launch-bound anyway.)
        gates = (jnp.dot(inp, w_l[0:din, :],
                         preferred_element_type=jnp.float32)
                 + jnp.dot(h, w_l[din:din + H, :],
                           preferred_element_type=jnp.float32)
                 + b_ref[layer])
        # One sigmoid + one tanh over the full (B, 4H) gates vreg, then lane
        # slices: 3 transcendentals per cell instead of 5 — these sit on the
        # serial layer-to-layer dependency chain.
        sig = jax.nn.sigmoid(gates)
        th = jnp.tanh(gates)
        i_g = sig[:, 0 * H:1 * H]
        f_g = sig[:, 1 * H:2 * H]
        g_g = th[:, 2 * H:3 * H]
        o_g = sig[:, 3 * H:4 * H]
        c_new = f_g * c + i_g * g_g
        h_new = o_g * jnp.tanh(c_new)
        st_out[layer, 0] = h_new
        st_out[layer, 1] = c_new
        inp = h_new

    # Output head: softmax(h2 @ W_out^T + b_out, axis=1).
    logits = (jnp.dot(inp, wo_ref[...], preferred_element_type=jnp.float32)
              + bo_ref[...])
    m = jnp.max(logits, axis=1, keepdims=True)
    e = jnp.exp(logits - m)
    # approx=True really routes the reciprocal to the (otherwise idle) EUP;
    # relative error ~1e-4, validated with a relaxed tolerance in __main__.
    return e * pl.reciprocal(jnp.sum(e, axis=1, keepdims=True), approx=True)


# ---------------------------------------------------------------------------
# Kernel 1: single step (exact module forward), no grid, everything in VMEM.
# ---------------------------------------------------------------------------
def _policy_step_kernel(x_ref, st_ref, w_ref, b_ref, wo_ref, bo_ref,
                        y_ref, st_out_ref):
    y = _stacked_lstm_step(x_ref[...], st_ref, st_out_ref,
                           w_ref, b_ref, wo_ref, bo_ref)
    y_ref[...] = y.astype(y_ref.dtype)


# ---------------------------------------------------------------------------
# Kernel 2: T-step rollout. grid=(T,), weights/state VMEM-resident, state
# carried in scratch, written back to HBM only at the last step.
# ---------------------------------------------------------------------------
def _policy_rollout_kernel(xs_ref, st0_ref, w_ref, b_ref, wo_ref, bo_ref,
                           ys_ref, st_out_ref, st_scratch):
    t = pl.program_id(0)

    @pl.when(t == 0)
    def _():
        st_scratch[...] = st0_ref[...]

    y = _stacked_lstm_step(xs_ref[0], st_scratch, st_scratch,
                           w_ref, b_ref, wo_ref, bo_ref)
    ys_ref[0] = y.astype(ys_ref.dtype)

    @pl.when(t == pl.num_programs(0) - 1)
    def _():
        st_out_ref[...] = st_scratch[...]


# ---------------------------------------------------------------------------
# Parameter / state packing (done ONCE at load time, not in the hot path).
# ---------------------------------------------------------------------------
def prepare_params(raw):
    """Stack all per-layer weights/biases into MXU-ready slabs."""
    hids = [raw[f"lstm{l}"][1].shape[1] for l in range(3)]
    assert hids[0] == hids[1] == hids[2], (
        "packed layout requires equal hidden sizes per layer")
    H = hids[0]
    dins = [raw["lstm0"][0].shape[1], hids[0], hids[1]]
    wrows = max(d + H for d in dins)
    wrows = ((wrows + 7) // 8) * 8          # sublane-aligned slab height

    w_slabs, b_slabs = [], []
    for l in range(3):
        w_ih, w_hh, b_ih, b_hh = raw[f"lstm{l}"]
        w = jnp.concatenate([jnp.transpose(w_ih), jnp.transpose(w_hh)], axis=0)
        pad = wrows - w.shape[0]
        if pad:
            w = jnp.pad(w, ((0, pad), (0, 0)))   # pad rows never read
        w_slabs.append(w)
        b_slabs.append((b_ih + b_hh).reshape(1, 4 * H))

    return {
        "w": jnp.stack(w_slabs),             # (3, wrows, 4H)
        "b": jnp.stack(b_slabs),             # (3, 1, 4H)
        "wo": jnp.transpose(raw["out_w"]),   # (H, O)
        "bo": raw["out_b"].reshape(1, -1),   # (1, O)
    }


def pack_state(st_states):
    """[[h0,c0],[h1,c1],[h2,c2]] -> (3, 2, B, H) array."""
    return jnp.stack([jnp.stack([h, c]) for h, c in st_states])


def unpack_state(state):
    """(3, 2, B, H) -> [[h0,c0],[h1,c1],[h2,c2]] (interop / inspection only)."""
    return [[state[l, 0], state[l, 1]] for l in range(3)]


# ---------------------------------------------------------------------------
# Wrappers: exactly one pallas_call in each hot path.
# ---------------------------------------------------------------------------
@functools.partial(jax.jit, donate_argnums=(2,))
def policy_lstm_forward(packed, x, state):
    """Single step, mirrors Policy_LSTMNetwork.forward.

    `state` is the packed (3, 2, B, H) array (see pack_state); the returned
    state is packed the same way. The state arg is donated and aliased to
    the state output, so no fresh HBM buffer is allocated per step.
    """
    B = x.shape[0]
    out_dim = packed["wo"].shape[1]
    y, new_state = pl.pallas_call(
        _policy_step_kernel,
        out_shape=(
            jax.ShapeDtypeStruct((B, out_dim), jnp.float32),
            jax.ShapeDtypeStruct(state.shape, jnp.float32),
        ),
        in_specs=[_VMEM] * 6,
        out_specs=(_VMEM, _VMEM),
        input_output_aliases={1: 1},          # state in -> state out
    )(x, state, packed["w"], packed["b"], packed["wo"], packed["bo"])
    return y, new_state


@functools.partial(jax.jit, donate_argnums=(2,))
def policy_lstm_rollout(packed, xs, state):
    """T policy steps in ONE pallas_call: grid over time, weights resident."""
    T, B, din = xs.shape
    n_layers, _, _, H = state.shape
    wrows = packed["w"].shape[1]
    out_dim = packed["wo"].shape[1]

    grid_spec = pltpu.PrefetchScalarGridSpec(
        num_scalar_prefetch=0,
        grid=(T,),
        in_specs=[
            pl.BlockSpec((1, B, din), lambda t: (t, 0, 0)),              # x_t
            pl.BlockSpec((n_layers, 2, B, H), lambda t: (0, 0, 0, 0)),   # state0
            pl.BlockSpec((n_layers, wrows, 4 * H), lambda t: (0, 0, 0)),  # W
            pl.BlockSpec((n_layers, 1, 4 * H), lambda t: (0, 0, 0)),      # b
            pl.BlockSpec((H, out_dim), lambda t: (0, 0)),                 # Wo
            pl.BlockSpec((1, out_dim), lambda t: (0, 0)),                 # bo
        ],
        out_specs=(
            pl.BlockSpec((1, B, out_dim), lambda t: (t, 0, 0)),           # y_t
            pl.BlockSpec((n_layers, 2, B, H), lambda t: (0, 0, 0, 0)),    # final
        ),
        scratch_shapes=[pltpu.VMEM((n_layers, 2, B, H), jnp.float32)],
    )
    ys, new_state = pl.pallas_call(
        _policy_rollout_kernel,
        out_shape=(
            jax.ShapeDtypeStruct((T, B, out_dim), jnp.float32),
            jax.ShapeDtypeStruct(state.shape, jnp.float32),
        ),
        grid_spec=grid_spec,
        input_output_aliases={1: 1},
        compiler_params=pltpu.CompilerParams(
            # State is carried sequentially across time -> must be arbitrary.
            dimension_semantics=("arbitrary",)),
    )(xs, state, packed["w"], packed["b"], packed["wo"], packed["bo"])
    return ys, new_state


# ---------------------------------------------------------------------------
# Deterministic parameter init (PyTorch-style uniform(-1/sqrt(H), 1/sqrt(H)))
# ---------------------------------------------------------------------------
def init_params(key, input_shp, n0, n1, n2, output_shp):
    def u(k, shape, bound):
        return jax.random.uniform(k, shape, jnp.float32, -bound, bound)

    keys = jax.random.split(key, 14)
    params = {}
    sizes = [(input_shp, n0), (n0, n1), (n1, n2)]
    ki = 0
    for li, (in_sz, hid) in enumerate(sizes):
        bnd = 1.0 / jnp.sqrt(hid).astype(jnp.float32)
        params[f"lstm{li}"] = (
            u(keys[ki + 0], (4 * hid, in_sz), bnd),
            u(keys[ki + 1], (4 * hid, hid), bnd),
            u(keys[ki + 2], (4 * hid,), bnd),
            u(keys[ki + 3], (4 * hid,), bnd),
        )
        ki += 4
    bnd = 1.0 / jnp.sqrt(n2).astype(jnp.float32)
    params["out_w"] = u(keys[ki + 0], (output_shp, n2), bnd)
    params["out_b"] = u(keys[ki + 1], (output_shp,), bnd)
    return params


# ---------------------------------------------------------------------------
# Pure-JAX reference (for correctness), uses the raw PyTorch-layout params.
# ---------------------------------------------------------------------------
def _ref_lstm_cell(x, h, c, w_ih, w_hh, b_ih, b_hh):
    gates = x @ w_ih.T + b_ih + h @ w_hh.T + b_hh
    H = h.shape[1]
    i = jax.nn.sigmoid(gates[:, 0 * H:1 * H])
    f = jax.nn.sigmoid(gates[:, 1 * H:2 * H])
    g = jnp.tanh(gates[:, 2 * H:3 * H])
    o = jax.nn.sigmoid(gates[:, 3 * H:4 * H])
    c_new = f * c + i * g
    return o * jnp.tanh(c_new), c_new


def _ref_forward(params, x, st):
    h0, c0 = _ref_lstm_cell(x, st[0][0], st[0][1], *params["lstm0"])
    h1, c1 = _ref_lstm_cell(h0, st[1][0], st[1][1], *params["lstm1"])
    h2, c2 = _ref_lstm_cell(h1, st[2][0], st[2][1], *params["lstm2"])
    logits = h2 @ params["out_w"].T + params["out_b"]
    return jax.nn.softmax(logits, axis=1), [[h0, c0], [h1, c1], [h2, c2]]


# ---------------------------------------------------------------------------
if __name__ == "__main__":
    B = 2      # NOTE: batching more envs (B >= 8) is essentially free here.
    T = 8
    input_shp, n0, n1, n2, output_shp = 16, 32, 32, 32, 8

    key = jax.random.PRNGKey(0)
    k_param, k_x, k_h, k_xs = jax.random.split(key, 4)
    raw_params = init_params(k_param, input_shp, n0, n1, n2, output_shp)
    packed_params = prepare_params(raw_params)        # one-time packing

    x = jax.random.normal(k_x, (B, input_shp), jnp.float32)
    hk = jax.random.split(k_h, 6)
    st_states = [
        [jax.random.normal(hk[0], (B, n0), jnp.float32),
         jax.random.normal(hk[1], (B, n0), jnp.float32)],
        [jax.random.normal(hk[2], (B, n1), jnp.float32),
         jax.random.normal(hk[3], (B, n1), jnp.float32)],
        [jax.random.normal(hk[4], (B, n2), jnp.float32),
         jax.random.normal(hk[5], (B, n2), jnp.float32)],
    ]

    # ---- single-step forward (exact module semantics) --------------------
    y, new_state = policy_lstm_forward(packed_params, x, pack_state(st_states))
    jax.block_until_ready((y, new_state))

    y_ref, st_ref = _ref_forward(raw_params, x, st_states)
    # y tolerance relaxed for the approx (EUP) reciprocal in the softmax.
    assert jnp.allclose(y, y_ref, atol=1e-3), "softmax output mismatch"
    for (h, c), (hr, cr) in zip(unpack_state(new_state), st_ref):
        assert jnp.allclose(h, hr, atol=1e-5), "hidden state mismatch"
        assert jnp.allclose(c, cr, atol=1e-5), "cell state mismatch"

    # ---- T-step rollout: one pallas_call, launch/DMA amortized over T ----
    xs = jax.random.normal(k_xs, (T, B, input_shp), jnp.float32)
    ys, final_state = policy_lstm_rollout(packed_params, xs,
                                          pack_state(st_states))
    jax.block_until_ready((ys, final_state))

    st = st_states
    ys_ref = []
    for t in range(T):
        y_t, st = _ref_forward(raw_params, xs[t], st)
        ys_ref.append(y_t)
    ys_ref = jnp.stack(ys_ref)
    assert jnp.allclose(ys, ys_ref, atol=1e-3), "rollout output mismatch"
    for (h, c), (hr, cr) in zip(unpack_state(final_state), st):
        assert jnp.allclose(h, hr, atol=1e-4), "rollout hidden state mismatch"
        assert jnp.allclose(c, cr, atol=1e-4), "rollout cell state mismatch"

    print("KERNEL_OK")
</pallas_src>

<mosaic_0001>
module attributes {stable_mosaic.version = 11 : i64} {
  func.func @_policy_step_kernel(%arg0: memref<2x16xf32, #tpu.memory_space<vmem>>, %arg1: memref<3x2x2x32xf32, #tpu.memory_space<vmem>>, %arg2: memref<3x64x128xf32, #tpu.memory_space<vmem>>, %arg3: memref<3x1x128xf32, #tpu.memory_space<vmem>>, %arg4: memref<32x8xf32, #tpu.memory_space<vmem>>, %arg5: memref<1x8xf32, #tpu.memory_space<vmem>>, %arg6: memref<2x8xf32, #tpu.memory_space<vmem>>, %arg7: memref<3x2x2x32xf32, #tpu.memory_space<vmem>>) attributes {dimension_semantics = [], scalar_prefetch = 0 : i64, scratch_operands = 0 : i64, tpu.core_type = #tpu.core_type<tc>} {
    %c0 = arith.constant 0 : index
    %c0_0 = arith.constant 0 : index
    %0 = vector.load %arg0[%c0, %c0_0] : memref<2x16xf32, #tpu.memory_space<vmem>>, vector<2x16xf32>
    %c0_1 = arith.constant 0 : index
    %c0_2 = arith.constant 0 : index
    %c0_3 = arith.constant 0 : index
    %c0_4 = arith.constant 0 : index
    %1 = vector.load %arg1[%c0_1, %c0_2, %c0_3, %c0_4] : memref<3x2x2x32xf32, #tpu.memory_space<vmem>>, vector<1x1x2x32xf32>
    %2 = vector.shape_cast %1 : vector<1x1x2x32xf32> to vector<2x32xf32>
    %c0_5 = arith.constant 0 : index
    %c1 = arith.constant 1 : index
    %c0_6 = arith.constant 0 : index
    %c0_7 = arith.constant 0 : index
    %3 = vector.load %arg1[%c0_5, %c1, %c0_6, %c0_7] : memref<3x2x2x32xf32, #tpu.memory_space<vmem>>, vector<1x1x2x32xf32>
    %4 = vector.shape_cast %3 : vector<1x1x2x32xf32> to vector<2x32xf32>
    %c0_8 = arith.constant 0 : index
    %c0_9 = arith.constant 0 : index
    %c0_10 = arith.constant 0 : index
    %5 = vector.load %arg2[%c0_8, %c0_9, %c0_10] : memref<3x64x128xf32, #tpu.memory_space<vmem>>, vector<1x64x128xf32>
    %6 = vector.shape_cast %5 : vector<1x64x128xf32> to vector<64x128xf32>
    %7 = vector.extract_strided_slice %6 {offsets = [0, 0], sizes = [16, 128], strides = [1, 1]} : vector<64x128xf32> to vector<16x128xf32>
    %cst = arith.constant dense<0.000000e+00> : vector<2x128xf32>
    %8 = tpu.matmul %0, %7, %cst {dimension_numbers = #tpu.dot_dimension_numbers<[1], [0], [0], [1], [0, 0, 1, 1], [], []>} : vector<2x16xf32>, vector<16x128xf32>, vector<2x128xf32> -> vector<2x128xf32>
    %9 = vector.extract_strided_slice %6 {offsets = [16, 0], sizes = [32, 128], strides = [1, 1]} : vector<64x128xf32> to vector<32x128xf32>
    %cst_11 = arith.constant dense<0.000000e+00> : vector<2x128xf32>
    %10 = tpu.matmul %2, %9, %cst_11 {dimension_numbers = #tpu.dot_dimension_numbers<[1], [0], [0], [1], [0, 0, 1, 1], [], []>} : vector<2x32xf32>, vector<32x128xf32>, vector<2x128xf32> -> vector<2x128xf32>
    %11 = arith.addf %8, %10 : vector<2x128xf32>
    %c0_12 = arith.constant 0 : index
    %c0_13 = arith.constant 0 : index
    %c0_14 = arith.constant 0 : index
    %12 = vector.load %arg3[%c0_12, %c0_13, %c0_14] : memref<3x1x128xf32, #tpu.memory_space<vmem>>, vector<1x1x128xf32>
    %13 = vector.shape_cast %12 : vector<1x1x128xf32> to vector<1x128xf32>
    %14 = vector.broadcast %13 : vector<1x128xf32> to vector<2x128xf32>
    %15 = arith.addf %11, %14 : vector<2x128xf32>
    %16 = arith.negf %15 : vector<2x128xf32>
    %17 = math.exp %16 : vector<2x128xf32>
    %cst_15 = arith.constant 1.000000e+00 : f32
    %18 = vector.broadcast %cst_15 : f32 to vector<2x128xf32>
    %19 = arith.addf %18, %17 : vector<2x128xf32>
    %20 = arith.divf %18, %19 : vector<2x128xf32>
    %21 = math.tanh %15 : vector<2x128xf32>
    %22 = vector.extract_strided_slice %20 {offsets = [0, 0], sizes = [2, 32], strides = [1, 1]} : vector<2x128xf32> to vector<2x32xf32>
    %23 = vector.extract_strided_slice %20 {offsets = [0, 32], sizes = [2, 32], strides = [1, 1]} : vector<2x128xf32> to vector<2x32xf32>
    %24 = vector.extract_strided_slice %21 {offsets = [0, 64], sizes = [2, 32], strides = [1, 1]} : vector<2x128xf32> to vector<2x32xf32>
    %25 = vector.extract_strided_slice %20 {offsets = [0, 96], sizes = [2, 32], strides = [1, 1]} : vector<2x128xf32> to vector<2x32xf32>
    %26 = arith.mulf %23, %4 : vector<2x32xf32>
    %27 = arith.mulf %22, %24 : vector<2x32xf32>
    %28 = arith.addf %26, %27 : vector<2x32xf32>
    %29 = math.tanh %28 : vector<2x32xf32>
    %30 = arith.mulf %25, %29 : vector<2x32xf32>
    %c0_16 = arith.constant 0 : index
    %c0_17 = arith.constant 0 : index
    %c0_18 = arith.constant 0 : index
    %c0_19 = arith.constant 0 : index
    %31 = vector.load %arg7[%c0_16, %c0_17, %c0_18, %c0_19] : memref<3x2x2x32xf32, #tpu.memory_space<vmem>>, vector<1x1x2x32xf32>
    %32 = vector.shape_cast %31 : vector<1x1x2x32xf32> to vector<2x32xf32>
    %33 = vector.shape_cast %30 : vector<2x32xf32> to vector<1x1x2x32xf32>
    tpu.vector_store %arg7[%c0_16, %c0_17, %c0_18, %c0_19], %33 {strides = array<i32>} : memref<3x2x2x32xf32, #tpu.memory_space<vmem>>, vector<1x1x2x32xf32>,
    %c0_20 = arith.constant 0 : index
    %c1_21 = arith.constant 1 : index
    %c0_22 = arith.constant 0 : index
    %c0_23 = arith.constant 0 : index
    %34 = vector.load %arg7[%c0_20, %c1_21, %c0_22, %c0_23] : memref<3x2x2x32xf32, #tpu.memory_space<vmem>>, vector<1x1x2x32xf32>
    %35 = vector.shape_cast %34 : vector<1x1x2x32xf32> to vector<2x32xf32>
    %36 = vector.shape_cast %28 : vector<2x32xf32> to vector<1x1x2x32xf32>
    tpu.vector_store %arg7[%c0_20, %c1_21, %c0_22, %c0_23], %36 {strides = array<i32>} : memref<3x2x2x32xf32, #tpu.memory_space<vmem>>, vector<1x1x2x32xf32>,
    %c1_24 = arith.constant 1 : index
    %c0_25 = arith.constant 0 : index
    %c0_26 = arith.constant 0 : index
    %c0_27 = arith.constant 0 : index
    %37 = vector.load %arg1[%c1_24, %c0_25, %c0_26, %c0_27] : memref<3x2x2x32xf32, #tpu.memory_space<vmem>>, vector<1x1x2x32xf32>
    %38 = vector.shape_cast %37 : vector<1x1x2x32xf32> to vector<2x32xf32>
    %c1_28 = arith.constant 1 : index
    %c1_29 = arith.constant 1 : index
    %c0_30 = arith.constant 0 : index
    %c0_31 = arith.constant 0 : index
    %39 = vector.load %arg1[%c1_28, %c1_29, %c0_30, %c0_31] : memref<3x2x2x32xf32, #tpu.memory_space<vmem>>, vector<1x1x2x32xf32>
    %40 = vector.shape_cast %39 : vector<1x1x2x32xf32> to vector<2x32xf32>
    %c1_32 = arith.constant 1 : index
    %c0_33 = arith.constant 0 : index
    %c0_34 = arith.constant 0 : index
    %41 = vector.load %arg2[%c1_32, %c0_33, %c0_34] : memref<3x64x128xf32, #tpu.memory_space<vmem>>, vector<1x64x128xf32>
    %42 = vector.shape_cast %41 : vector<1x64x128xf32> to vector<64x128xf32>
    %43 = vector.extract_strided_slice %42 {offsets = [0, 0], sizes = [32, 128], strides = [1, 1]} : vector<64x128xf32> to vector<32x128xf32>
    %cst_35 = arith.constant dense<0.000000e+00> : vector<2x128xf32>
    %44 = tpu.matmul %30, %43, %cst_35 {dimension_numbers = #tpu.dot_dimension_numbers<[1], [0], [0], [1], [0, 0, 1, 1], [], []>} : vector<2x32xf32>, vector<32x128xf32>, vector<2x128xf32> -> vector<2x128xf32>
    %45 = vector.extract_strided_slice %42 {offsets = [32, 0], sizes = [32, 128], strides = [1, 1]} : vector<64x128xf32> to vector<32x128xf32>
    %cst_36 = arith.constant dense<0.000000e+00> : vector<2x128xf32>
    %46 = tpu.matmul %38, %45, %cst_36 {dimension_numbers = #tpu.dot_dimension_numbers<[1], [0], [0], [1], [0, 0, 1, 1], [], []>} : vector<2x32xf32>, vector<32x128xf32>, vector<2x128xf32> -> vector<2x128xf32>
    %47 = arith.addf %44, %46 : vector<2x128xf32>
    %c1_37 = arith.constant 1 : index
    %c0_38 = arith.constant 0 : index
    %c0_39 = arith.constant 0 : index
    %48 = vector.load %arg3[%c1_37, %c0_38, %c0_39] : memref<3x1x128xf32, #tpu.memory_space<vmem>>, vector<1x1x128xf32>
    %49 = vector.shape_cast %48 : vector<1x1x128xf32> to vector<1x128xf32>
    %50 = vector.broadcast %49 : vector<1x128xf32> to vector<2x128xf32>
    %51 = arith.addf %47, %50 : vector<2x128xf32>
    %52 = arith.negf %51 : vector<2x128xf32>
    %53 = math.exp %52 : vector<2x128xf32>
    %cst_40 = arith.constant 1.000000e+00 : f32
    %54 = vector.broadcast %cst_40 : f32 to vector<2x128xf32>
    %55 = arith.addf %54, %53 : vector<2x128xf32>
    %56 = arith.divf %54, %55 : vector<2x128xf32>
    %57 = math.tanh %51 : vector<2x128xf32>
    %58 = vector.extract_strided_slice %56 {offsets = [0, 0], sizes = [2, 32], strides = [1, 1]} : vector<2x128xf32> to vector<2x32xf32>
    %59 = vector.extract_strided_slice %56 {offsets = [0, 32], sizes = [2, 32], strides = [1, 1]} : vector<2x128xf32> to vector<2x32xf32>
    %60 = vector.extract_strided_slice %57 {offsets = [0, 64], sizes = [2, 32], strides = [1, 1]} : vector<2x128xf32> to vector<2x32xf32>
    %61 = vector.extract_strided_slice %56 {offsets = [0, 96], sizes = [2, 32], strides = [1, 1]} : vector<2x128xf32> to vector<2x32xf32>
    %62 = arith.mulf %59, %40 : vector<2x32xf32>
    %63 = arith.mulf %58, %60 : vector<2x32xf32>
    %64 = arith.addf %62, %63 : vector<2x32xf32>
    %65 = math.tanh %64 : vector<2x32xf32>
    %66 = arith.mulf %61, %65 : vector<2x32xf32>
    %c1_41 = arith.constant 1 : index
    %c0_42 = arith.constant 0 : index
    %c0_43 = arith.constant 0 : index
    %c0_44 = arith.constant 0 : index
    %67 = vector.load %arg7[%c1_41, %c0_42, %c0_43, %c0_44] : memref<3x2x2x32xf32, #tpu.memory_space<vmem>>, vector<1x1x2x32xf32>
    %68 = vector.shape_cast %67 : vector<1x1x2x32xf32> to vector<2x32xf32>
    %69 = vector.shape_cast %66 : vector<2x32xf32> to vector<1x1x2x32xf32>
    tpu.vector_store %arg7[%c1_41, %c0_42, %c0_43, %c0_44], %69 {strides = array<i32>} : memref<3x2x2x32xf32, #tpu.memory_space<vmem>>, vector<1x1x2x32xf32>,
    %c1_45 = arith.constant 1 : index
    %c1_46 = arith.constant 1 : index
    %c0_47 = arith.constant 0 : index
    %c0_48 = arith.constant 0 : index
    %70 = vector.load %arg7[%c1_45, %c1_46, %c0_47, %c0_48] : memref<3x2x2x32xf32, #tpu.memory_space<vmem>>, vector<1x1x2x32xf32>
    %71 = vector.shape_cast %70 : vector<1x1x2x32xf32> to vector<2x32xf32>
    %72 = vector.shape_cast %64 : vector<2x32xf32> to vector<1x1x2x32xf32>
    tpu.vector_store %arg7[%c1_45, %c1_46, %c0_47, %c0_48], %72 {strides = array<i32>} : memref<3x2x2x32xf32, #tpu.memory_space<vmem>>, vector<1x1x2x32xf32>,
    %c2 = arith.constant 2 : index
    %c0_49 = arith.constant 0 : index
    %c0_50 = arith.constant 0 : index
    %c0_51 = arith.constant 0 : index
    %73 = vector.load %arg1[%c2, %c0_49, %c0_50, %c0_51] : memref<3x2x2x32xf32, #tpu.memory_space<vmem>>, vector<1x1x2x32xf32>
    %74 = vector.shape_cast %73 : vector<1x1x2x32xf32> to vector<2x32xf32>
    %c2_52 = arith.constant 2 : index
    %c1_53 = arith.constant 1 : index
    %c0_54 = arith.constant 0 : index
    %c0_55 = arith.constant 0 : index
    %75 = vector.load %arg1[%c2_52, %c1_53, %c0_54, %c0_55] : memref<3x2x2x32xf32, #tpu.memory_space<vmem>>, vector<1x1x2x32xf32>
    %76 = vector.shape_cast %75 : vector<1x1x2x32xf32> to vector<2x32xf32>
    %c2_56 = arith.constant 2 : index
    %c0_57 = arith.constant 0 : index
    %c0_58 = arith.constant 0 : index
    %77 = vector.load %arg2[%c2_56, %c0_57, %c0_58] : memref<3x64x128xf32, #tpu.memory_space<vmem>>, vector<1x64x128xf32>
    %78 = vector.shape_cast %77 : vector<1x64x128xf32> to vector<64x128xf32>
    %79 = vector.extract_strided_slice %78 {offsets = [0, 0], sizes = [32, 128], strides = [1, 1]} : vector<64x128xf32> to vector<32x128xf32>
    %cst_59 = arith.constant dense<0.000000e+00> : vector<2x128xf32>
    %80 = tpu.matmul %66, %79, %cst_59 {dimension_numbers = #tpu.dot_dimension_numbers<[1], [0], [0], [1], [0, 0, 1, 1], [], []>} : vector<2x32xf32>, vector<32x128xf32>, vector<2x128xf32> -> vector<2x128xf32>
    %81 = vector.extract_strided_slice %78 {offsets = [32, 0], sizes = [32, 128], strides = [1, 1]} : vector<64x128xf32> to vector<32x128xf32>
    %cst_60 = arith.constant dense<0.000000e+00> : vector<2x128xf32>
    %82 = tpu.matmul %74, %81, %cst_60 {dimension_numbers = #tpu.dot_dimension_numbers<[1], [0], [0], [1], [0, 0, 1, 1], [], []>} : vector<2x32xf32>, vector<32x128xf32>, vector<2x128xf32> -> vector<2x128xf32>
    %83 = arith.addf %80, %82 : vector<2x128xf32>
    %c2_61 = arith.constant 2 : index
    %c0_62 = arith.constant 0 : index
    %c0_63 = arith.constant 0 : index
    %84 = vector.load %arg3[%c2_61, %c0_62, %c0_63] : memref<3x1x128xf32, #tpu.memory_space<vmem>>, vector<1x1x128xf32>
    %85 = vector.shape_cast %84 : vector<1x1x128xf32> to vector<1x128xf32>
    %86 = vector.broadcast %85 : vector<1x128xf32> to vector<2x128xf32>
    %87 = arith.addf %83, %86 : vector<2x128xf32>
    %88 = arith.negf %87 : vector<2x128xf32>
    %89 = math.exp %88 : vector<2x128xf32>
    %cst_64 = arith.constant 1.000000e+00 : f32
    %90 = vector.broadcast %cst_64 : f32 to vector<2x128xf32>
    %91 = arith.addf %90, %89 : vector<2x128xf32>
    %92 = arith.divf %90, %91 : vector<2x128xf32>
    %93 = math.tanh %87 : vector<2x128xf32>
    %94 = vector.extract_strided_slice %92 {offsets = [0, 0], sizes = [2, 32], strides = [1, 1]} : vector<2x128xf32> to vector<2x32xf32>
    %95 = vector.extract_strided_slice %92 {offsets = [0, 32], sizes = [2, 32], strides = [1, 1]} : vector<2x128xf32> to vector<2x32xf32>
    %96 = vector.extract_strided_slice %93 {offsets = [0, 64], sizes = [2, 32], strides = [1, 1]} : vector<2x128xf32> to vector<2x32xf32>
    %97 = vector.extract_strided_slice %92 {offsets = [0, 96], sizes = [2, 32], strides = [1, 1]} : vector<2x128xf32> to vector<2x32xf32>
    %98 = arith.mulf %95, %76 : vector<2x32xf32>
    %99 = arith.mulf %94, %96 : vector<2x32xf32>
    %100 = arith.addf %98, %99 : vector<2x32xf32>
    %101 = math.tanh %100 : vector<2x32xf32>
    %102 = arith.mulf %97, %101 : vector<2x32xf32>
    %c2_65 = arith.constant 2 : index
    %c0_66 = arith.constant 0 : index
    %c0_67 = arith.constant 0 : index
    %c0_68 = arith.constant 0 : index
    %103 = vector.load %arg7[%c2_65, %c0_66, %c0_67, %c0_68] : memref<3x2x2x32xf32, #tpu.memory_space<vmem>>, vector<1x1x2x32xf32>
    %104 = vector.shape_cast %103 : vector<1x1x2x32xf32> to vector<2x32xf32>
    %105 = vector.shape_cast %102 : vector<2x32xf32> to vector<1x1x2x32xf32>
    tpu.vector_store %arg7[%c2_65, %c0_66, %c0_67, %c0_68], %105 {strides = array<i32>} : memref<3x2x2x32xf32, #tpu.memory_space<vmem>>, vector<1x1x2x32xf32>,
    %c2_69 = arith.constant 2 : index
    %c1_70 = arith.constant 1 : index
    %c0_71 = arith.constant 0 : index
    %c0_72 = arith.constant 0 : index
    %106 = vector.load %arg7[%c2_69, %c1_70, %c0_71, %c0_72] : memref<3x2x2x32xf32, #tpu.memory_space<vmem>>, vector<1x1x2x32xf32>
    %107 = vector.shape_cast %106 : vector<1x1x2x32xf32> to vector<2x32xf32>
    %108 = vector.shape_cast %100 : vector<2x32xf32> to vector<1x1x2x32xf32>
    tpu.vector_store %arg7[%c2_69, %c1_70, %c0_71, %c0_72], %108 {strides = array<i32>} : memref<3x2x2x32xf32, #tpu.memory_space<vmem>>, vector<1x1x2x32xf32>,
    %c0_73 = arith.constant 0 : index
    %c0_74 = arith.constant 0 : index
    %109 = vector.load %arg4[%c0_73, %c0_74] : memref<32x8xf32, #tpu.memory_space<vmem>>, vector<32x8xf32>
    %cst_75 = arith.constant dense<0.000000e+00> : vector<2x8xf32>
    %110 = tpu.matmul %102, %109, %cst_75 {dimension_numbers = #tpu.dot_dimension_numbers<[1], [0], [0], [1], [0, 0, 1, 1], [], []>} : vector<2x32xf32>, vector<32x8xf32>, vector<2x8xf32> -> vector<2x8xf32>
    %c0_76 = arith.constant 0 : index
    %c0_77 = arith.constant 0 : index
    %111 = vector.load %arg5[%c0_76, %c0_77] : memref<1x8xf32, #tpu.memory_space<vmem>>, vector<1x8xf32>
    %112 = vector.broadcast %111 : vector<1x8xf32> to vector<2x8xf32>
    %113 = arith.addf %110, %112 : vector<2x8xf32>
    %cst_78 = arith.constant dense<0xFF800000> : vector<2xf32>
    %114 = vector.multi_reduction <maximumf>, %113, %cst_78 [1] : vector<2x8xf32> to vector<2xf32>
    %115 = vector.shape_cast %114 : vector<2xf32> to vector<2x1xf32>
    %116 = vector.broadcast %115 : vector<2x1xf32> to vector<2x8xf32>
    %117 = arith.subf %113, %116 : vector<2x8xf32>
    %118 = math.exp %117 : vector<2x8xf32>
    %cst_79 = arith.constant dense<0.000000e+00> : vector<2xf32>
    %119 = vector.multi_reduction <add>, %118, %cst_79 [1] : vector<2x8xf32> to vector<2xf32>
    %120 = vector.shape_cast %119 : vector<2xf32> to vector<2x1xf32>
    %121 = tpu.reciprocal %120 {approx = true} : vector<2x1xf32> -> vector<2x1xf32>
    %122 = vector.broadcast %121 : vector<2x1xf32> to vector<2x8xf32>
    %123 = arith.mulf %118, %122 : vector<2x8xf32>
    %c0_80 = arith.constant 0 : index
    %c0_81 = arith.constant 0 : index
    %124 = vector.load %arg6[%c0_80, %c0_81] : memref<2x8xf32, #tpu.memory_space<vmem>>, vector<2x8xf32>
    tpu.vector_store %arg6[%c0_80, %c0_81], %123 {strides = array<i32>} : memref<2x8xf32, #tpu.memory_space<vmem>>, vector<2x8xf32>,
    return
  }
}

</mosaic_0001>

<llo_original>
// kernel: policy_lstm_forward.1
$region0: #{policy_lstm_forward.1}
  #allocation0 [shape = 'u32[]', space=smem, size = 0x4, offset = 0x4, fixed_abs, tag = 'smem constant byte address 0x4 - core index']
  #allocation1 [shape = 'u32[144,128]{1,0:T(1,128)}', space=vmem, size = 0x12000, scoped, tag = 'internal scratch']
  %s0 = inlined_call_operand.vmem [shape: f32[2,16], index: 0, kind: input, shape index: {}]
  %s1 = inlined_call_operand.hbm [shape: f32[3,2,2,32], index: 1, kind: input, shape index: {}, may-alias: {1,7}]
  %s2 = inlined_call_operand.hbm [shape: f32[3,64,128], index: 2, kind: input, shape index: {}]
  %s3 = inlined_call_operand.vmem [shape: f32[3,1,128], index: 3, kind: input, shape index: {}]
  %s4 = inlined_call_operand.vmem [shape: f32[32,8], index: 4, kind: input, shape index: {}]
  %s5 = inlined_call_operand.vmem [shape: f32[1,8], index: 5, kind: input, shape index: {}]
  %s6 = inlined_call_operand.hbm [shape: f32[2,8], index: 6, kind: output, shape index: {0}]
  %s7 = inlined_call_operand.hbm [shape: f32[3,2,2,32], index: 7, kind: output, shape index: {1}, may-alias: {1,7}]
  %8 = xla_tuple %s6, %s7
  %s9 = sld [smem:[#allocation0]]
  $region50: #{policy_lstm_forward.1} parent=0
    _
  %s11 = ssub.s32 1, %s9
  %s12 = scalar_select 0, %s11, %s9
  $region1: #{policy_lstm_forward.1} parent=0
    #allocation2 [shape = 'u8[6144]{0}', space=vmem, size = 0x1800, scoped, tag = 'input window, operand 1, single buffered']
    #allocation3 [shape = 's32[1]{0}', space=sflag, size = 0x4, scoped, tag = 'scoped memory for policy_lstm_forward.1']
    #allocation4 [shape = 's32[1]{0}', space=sflag, size = 0x4, scoped, tag = 'scoped memory for policy_lstm_forward.1']
    #allocation5 [shape = 'u8[98304]{0}', space=vmem, size = 0x18000, scoped, tag = 'input window, operand 2, single buffered']
    #allocation6 [shape = 's32[1]{0}', space=sflag, size = 0x4, scoped, tag = 'scoped memory for policy_lstm_forward.1']
    #allocation7 [shape = 'u8[1024]{0}', space=vmem, size = 0x400, scoped, tag = 'output window, operand 0, single buffered']
    #allocation8 [shape = 'u8[6144]{0}', space=vmem, size = 0x1800, scoped, tag = 'output window, operand 1, single buffered']
    #allocation9 [shape = 's32[1]{0}', space=sflag, size = 0x4, scoped, tag = 'scoped memory for policy_lstm_forward.1']
    %13 = vsyncpa [#allocation3], 0
    %14 = vsyncpa [#allocation6], 0
    %15 = vsyncpa [#allocation4], 0
    %16 = vsyncpa [#allocation9], 0
    // Predicated region
    $region2: #{policy_lstm_forward.1} parent=1 // pred_check
      _
    $region3: #{policy_lstm_forward.1} parent=1 // pred_check_branch
      %18 = sbr.rel (0) target = $region5
    $region4: #{policy_lstm_forward.1} parent=1 // pred_region
      _
    $region5: #{policy_lstm_forward.1} parent=1 // pred_fallthru
      _
    // Predicated region
    $region6: #{policy_lstm_forward.1} parent=1 // pred_check
      _
    $region7: #{policy_lstm_forward.1} parent=1 // pred_check_branch
      %20 = sbr.rel (0) target = $region9
    $region8: #{policy_lstm_forward.1} parent=1 // pred_region
      %s22 = ssub.s32 192, 192
      %23 = vsyncadd [#allocation3], %s22
      %s24 = sshll.u32 [#allocation2], 4
      %s25 = int_to_ptr.vmem [resolvable:$true] %s24
      %30 = dma.hbm_to_vmem [thread:$0]  %s1, 192, %s25, [#allocation3], 32, 32, 2
    $region9: #{policy_lstm_forward.1} parent=1 // pred_fallthru
      _
    // Predicated region
    $region10: #{policy_lstm_forward.1} parent=1 // pred_check
      _
    $region11: #{policy_lstm_forward.1} parent=1 // pred_check_branch
      %32 = sbr.rel (0) target = $region13
    $region12: #{policy_lstm_forward.1} parent=1 // pred_region
      %s34 = ssub.s32 3072, 3072
      %35 = vsyncadd [#allocation6], %s34
      %s36 = sshll.u32 [#allocation5], 4
      %s37 = int_to_ptr.vmem [resolvable:$true] %s36
      %42 = dma.hbm_to_vmem [thread:$0]  %s2, 3072, %s37, [#allocation6], 128, 128, 8
    $region13: #{policy_lstm_forward.1} parent=1 // pred_fallthru
      _
    // Predicated region
    $region14: #{policy_lstm_forward.1} parent=1 // pred_check
      _
    $region15: #{policy_lstm_forward.1} parent=1 // pred_check_branch
      %44 = sbr.rel (0) target = $region17
    $region16: #{policy_lstm_forward.1} parent=1 // pred_region
      _
    $region17: #{policy_lstm_forward.1} parent=1 // pred_fallthru
      _
    // Predicated region
    $region18: #{policy_lstm_forward.1} parent=1 // pred_check
      _
    $region19: #{policy_lstm_forward.1} parent=1 // pred_check_branch
      %46 = sbr.rel (0) target = $region21
    $region20: #{policy_lstm_forward.1} parent=1 // pred_region
      _
    $region21: #{policy_lstm_forward.1} parent=1 // pred_fallthru
      _
    // Predicated region
    $region22: #{policy_lstm_forward.1} parent=1 // pred_check
      _
    $region23: #{policy_lstm_forward.1} parent=1 // pred_check_branch
      %48 = sbr.rel (0) target = $region25
    $region24: #{policy_lstm_forward.1} parent=1 // pred_region
      _
    $region25: #{policy_lstm_forward.1} parent=1 // pred_fallthru
      _
    // Predicated region
    $region26: #{policy_lstm_forward.1} parent=1 // pred_check
      _
    $region27: #{policy_lstm_forward.1} parent=1 // pred_check_branch
      %50 = sbr.rel (0) target = $region29
    $region28: #{policy_lstm_forward.1} parent=1 // pred_region
      %51 = dma.done [#allocation3], 192
    $region29: #{policy_lstm_forward.1} parent=1 // pred_fallthru
      _
    // Predicated region
    $region30: #{policy_lstm_forward.1} parent=1 // pred_check
      _
    $region31: #{policy_lstm_forward.1} parent=1 // pred_check_branch
      %53 = sbr.rel (0) target = $region33
    $region32: #{policy_lstm_forward.1} parent=1 // pred_region
      %54 = dma.done [#allocation6], 3072
    $region33: #{policy_lstm_forward.1} parent=1 // pred_fallthru
      _
    %v55 = vld [vmem:[%s0] sm:$0x3]
    %v56 = vld [vmem:[#allocation2] sm:$0x3]
    %s57 = scalar_lea.vmem [#allocation2], 2
    %v58 = vld [vmem:[%s57] sm:$0x3]
    %v59 = vld [vmem:[#allocation5] sm:$0xff]
    %v60 = vld [vmem:[#allocation5 + $0x8] sm:$0xff]
    %v61 = vld [vmem:[#allocation5 + $0x10] sm:$0xff]
    %v62 = vld [vmem:[#allocation5 + $0x18] sm:$0xff]
    %v63 = vld [vmem:[#allocation5 + $0x20] sm:$0xff]
    %v64 = vld [vmem:[#allocation5 + $0x28] sm:$0xff]
    %vm65 = vcmask 261120
    %v67 = vsel %vm65, %v56, 0
    %69 = vmatprep.subr.mxu0 0.0
    %70 = vmatpush1.msra.mxu0 %v61
    %71 = vmatprep.subr.mxu0 0.0
    %72 = vmatpush1.msra.mxu0 %v62
    %73 = vmatprep.subr.mxu0 0.0
    %74 = vmatpush1.msra.mxu0 %v63
    %75 = vmatprep.subr.mxu0 0.0
    %76 = vmatpush1.msra.mxu0 %v64
    %77 = vmatprep.subr.mxu0 0.0
    %78 = vmatpush1.msra.mxu0 0.0
    %79 = vmatprep.subr.mxu0 0.0
    %80 = vmatpush1.msra.mxu0 0.0
    %81 = vmatprep.subr.mxu0 0.0
    %82 = vmatpush1.msra.mxu0 0.0
    %83 = vmatprep.subr.mxu0 0.0
    %84 = vmatpush1.msra.mxu0 0.0
    %85 = vmatprep.subr.mxu0 0.0
    %86 = vmatpush1.msra.mxu0 0.0
    %87 = vmatprep.subr.mxu0 0.0
    %88 = vmatpush1.msra.mxu0 0.0
    %89 = vmatprep.subr.mxu0 0.0
    %90 = vmatpush1.msra.mxu0 0.0
    %91 = vmatprep.subr.mxu0 0.0
    %92 = vmatpush1.msra.mxu0 0.0
    %93 = vmatprep.subr.mxu0 0.0
    %94 = vmatpush1.msra.mxu0 0.0
    %95 = vmatprep.subr.mxu0 0.0
    %96 = vmatpush1.msra.mxu0 0.0
    %97 = vmatprep.subr.mxu0 0.0
    %98 = vmatpush1.msra.mxu0 0.0
    %99 = vmatprep.subr.mxu0 0.0
    %100 = vmatpush1.msra.mxu0 0.0
    %101 = vmatprep.subr.mxu0 0.0
    %102 = vmatpush1.msra.mxu0 0.0
    %103 = vmatprep.subr.mxu0 0.0
    %104 = vmatpush1.msra.mxu0 0.0
    %105 = vmatprep.subr.mxu0 0.0
    %106 = vmatpush1.msra.mxu0 0.0
    %107 = vmatprep.subr.mxu0 0.0
    %108 = vmatpush1.msra.mxu0 0.0
    %109 = vmatprep.subr.mxu0 0.0
    %110 = vmatpush1.msra.mxu0 0.0
    %111 = vmatprep.subr.mxu0 0.0
    %112 = vmatpush1.msra.mxu0 0.0
    %113 = vmatprep.subr.mxu0 0.0
    %114 = vmatpush1.msra.mxu0 0.0
    %115 = vmatprep.subr.mxu0 0.0
    %116 = vmatpush1.msra.mxu0 0.0
    %117 = vmatprep.subr.mxu0 0.0
    %118 = vmatpush1.msra.mxu0 0.0
    %119 = vmatprep.subr.mxu0 0.0
    %120 = vmatpush1.msra.mxu0 0.0
    %121 = vmatprep.subr.mxu0 0.0
    %122 = vmatpush1.msra.mxu0 0.0
    %123 = vmatprep.subr.mxu0 0.0
    %124 = vmatpush1.msra.mxu0 0.0
    %125 = vmatprep.subr.mxu0 0.0
    %126 = vmatpush1.msra.mxu0 0.0
    %127 = vmatprep.subr.mxu0 0.0
    %128 = vmatpush1.msra.mxu0 0.0
    %129 = vmatprep.subr.mxu0 0.0
    %130 = vmatpush1.msra.mxu0 0.0
    %131 = vmatprep.subr.mxu0 0.0
    %132 = vmatpush1.msra.mxu0 0.0
    %133 = vmatprep.mubr.f32.mxu0 0.0
    %134 = vmatmul.mubr.f32.gmra.mrb[0].mxu0 %v67
    %v135 = vpop.f32.mrb[0].mxu0
    %v136 = vadd.f32 0.0, %v135
    %v137 = vpop.f32.mrb[0].mxu0
    %138 = vdwg.mxu0
    %vm139 = vcmask 130048
    %v141 = vsel %vm139, %v55, 0
    %143 = vmatprep.subr.mxu0 0.0
    %144 = vmatpush1.msra.mxu0 %v59
    %145 = vmatprep.subr.mxu0 0.0
    %146 = vmatpush1.msra.mxu0 %v60
    %147 = vmatprep.subr.mxu0 0.0
    %148 = vmatpush1.msra.mxu0 0.0
    %149 = vmatprep.subr.mxu0 0.0
    %150 = vmatpush1.msra.mxu0 0.0
    %151 = vmatprep.subr.mxu0 0.0
    %152 = vmatpush1.msra.mxu0 0.0
    %153 = vmatprep.subr.mxu0 0.0
    %154 = vmatpush1.msra.mxu0 0.0
    %155 = vmatprep.subr.mxu0 0.0
    %156 = vmatpush1.msra.mxu0 0.0
    %157 = vmatprep.subr.mxu0 0.0
    %158 = vmatpush1.msra.mxu0 0.0
    %159 = vmatprep.subr.mxu0 0.0
    %160 = vmatpush1.msra.mxu0 0.0
    %161 = vmatprep.subr.mxu0 0.0
    %162 = vmatpush1.msra.mxu0 0.0
    %163 = vmatprep.subr.mxu0 0.0
    %164 = vmatpush1.msra.mxu0 0.0
    %165 = vmatprep.subr.mxu0 0.0
    %166 = vmatpush1.msra.mxu0 0.0
    %167 = vmatprep.subr.mxu0 0.0
    %168 = vmatpush1.msra.mxu0 0.0
    %169 = vmatprep.subr.mxu0 0.0
    %170 = vmatpush1.msra.mxu0 0.0
    %171 = vmatprep.subr.mxu0 0.0
    %172 = vmatpush1.msra.mxu0 0.0
    %173 = vmatprep.subr.mxu0 0.0
    %174 = vmatpush1.msra.mxu0 0.0
    %175 = vmatprep.subr.mxu0 0.0
    %176 = vmatpush1.msra.mxu0 0.0
    %177 = vmatprep.subr.mxu0 0.0
    %178 = vmatpush1.msra.mxu0 0.0
    %179 = vmatprep.subr.mxu0 0.0
    %180 = vmatpush1.msra.mxu0 0.0
    %181 = vmatprep.subr.mxu0 0.0
    %182 = vmatpush1.msra.mxu0 0.0
    %183 = vmatprep.subr.mxu0 0.0
    %184 = vmatpush1.msra.mxu0 0.0
    %185 = vmatprep.subr.mxu0 0.0
    %186 = vmatpush1.msra.mxu0 0.0
    %187 = vmatprep.subr.mxu0 0.0
    %188 = vmatpush1.msra.mxu0 0.0
    %189 = vmatprep.subr.mxu0 0.0
    %190 = vmatpush1.msra.mxu0 0.0
    %191 = vmatprep.subr.mxu0 0.0
    %192 = vmatpush1.msra.mxu0 0.0
    %193 = vmatprep.subr.mxu0 0.0
    %194 = vmatpush1.msra.mxu0 0.0
    %195 = vmatprep.subr.mxu0 0.0
    %196 = vmatpush1.msra.mxu0 0.0
    %197 = vmatprep.subr.mxu0 0.0
    %198 = vmatpush1.msra.mxu0 0.0
    %199 = vmatprep.subr.mxu0 0.0
    %200 = vmatpush1.msra.mxu0 0.0
    %201 = vmatprep.subr.mxu0 0.0
    %202 = vmatpush1.msra.mxu0 0.0
    %203 = vmatprep.subr.mxu0 0.0
    %204 = vmatpush1.msra.mxu0 0.0
    %205 = vmatprep.subr.mxu0 0.0
    %206 = vmatpush1.msra.mxu0 0.0
    %207 = vmatprep.mubr.f32.mxu0 0.0
    %208 = vmatmul.mubr.f32.gmra.mrb[0].mxu0 %v141
    %v209 = vpop.f32.mrb[0].mxu0
    %v210 = vadd.f32 %v136, %v209
    %v211 = vpop.f32.mrb[0].mxu0
    %212 = vdwg.mxu0
    %v213 = vld [vmem:[%s3] sm:$0x1]
    %v215 = vlaneseq
    %v216 = vshrl.u32 %v215, 7
    %v217 = vsub.s32 0, %v216
    %v218 = vrot.slane %v213, %v217
    %v220 = vadd.f32 %v210, %v218
    %v221 = vxor.u32 %v220, 2147483648
    %v222 = vmul.f32 %v221, 1.442695
    %v223 = vpow.pop %v222
    %v224 = vadd.f32 %v223, 1.0
    %v225 = vrcp.pop %v224
    %v226 = vmul.f32 1.0, %v225
    %v227 = vtanh.pop %v220
    %229 = vrot.lane.b32.xlu0 %v58, 32
    %v230 = vpop.permute.xlu0 %229
    %v232 = vmul.f32 %v226, %v230
    %234 = vrot.lane.b32.xlu0 %v227, 64
    %v235 = vpop.permute.xlu0 %234
    %v237 = vmul.f32 %v226, %v235
    %239 = vrot.lane.b32.xlu0 %v237, 32
    %v240 = vpop.permute.xlu0 %239
    %v242 = vadd.f32 %v232, %v240
    %v243 = vtanh.pop %v242
    %245 = vrot.lane.b32.xlu0 %v243, 64
    %v246 = vpop.permute.xlu0 %245
    %v248 = vmul.f32 %v226, %v246
    %250 = vrot.lane.b32.xlu0 %v248, 32
    %v251 = vpop.permute.xlu0 %250
    %vm253 = vcmask 254976
    %254 = vst.msk [vmem:[#allocation8] sm:$0x3] %vm253, %v251
    %256 = vrot.lane.b32.xlu0 %v242, 96
    %v257 = vpop.permute.xlu0 %256
    %s259 = scalar_lea.vmem [#allocation8], 2
    %260 = vst.msk [vmem:[%s259] sm:$0x3] %vm253, %v257
    %s261 = scalar_lea.vmem [#allocation2], 4
    %v262 = vld [vmem:[%s261] sm:$0x3]
    %s263 = scalar_lea.vmem [#allocation2], 6
    %v264 = vld [vmem:[%s263] sm:$0x3]
    %s265 = scalar_lea.vmem [#allocation5], 64
    %v266 = vld [vmem:[%s265] sm:$0xff]
    %v267 = vld [vmem:[%s265 + $0x8] sm:$0xff]
    %v268 = vld [vmem:[%s265 + $0x10] sm:$0xff]
    %v269 = vld [vmem:[%s265 + $0x18] sm:$0xff]
    %v270 = vld [vmem:[%s265 + $0x20] sm:$0xff]
    %v271 = vld [vmem:[%s265 + $0x28] sm:$0xff]
    %v272 = vld [vmem:[%s265 + $0x30] sm:$0xff]
    %v273 = vld [vmem:[%s265 + $0x38] sm:$0xff]
    %v275 = vsel %vm65, %v262, 0
    %277 = vmatprep.subr.mxu0 0.0
    %278 = vmatpush1.msra.mxu0 %v270
    %279 = vmatprep.subr.mxu0 0.0
    %280 = vmatpush1.msra.mxu0 %v271
    %281 = vmatprep.subr.mxu0 0.0
    %282 = vmatpush1.msra.mxu0 %v272
    %283 = vmatprep.subr.mxu0 0.0
    %284 = vmatpush1.msra.mxu0 %v273
    %285 = vmatprep.subr.mxu0 0.0
    %286 = vmatpush1.msra.mxu0 0.0
    %287 = vmatprep.subr.mxu0 0.0
    %288 = vmatpush1.msra.mxu0 0.0
    %289 = vmatprep.subr.mxu0 0.0
    %290 = vmatpush1.msra.mxu0 0.0
    %291 = vmatprep.subr.mxu0 0.0
    %292 = vmatpush1.msra.mxu0 0.0
    %293 = vmatprep.subr.mxu0 0.0
    %294 = vmatpush1.msra.mxu0 0.0
    %295 = vmatprep.subr.mxu0 0.0
    %296 = vmatpush1.msra.mxu0 0.0
    %297 = vmatprep.subr.mxu0 0.0
    %298 = vmatpush1.msra.mxu0 0.0
    %299 = vmatprep.subr.mxu0 0.0
    %300 = vmatpush1.msra.mxu0 0.0
    %301 = vmatprep.subr.mxu0 0.0
    %302 = vmatpush1.msra.mxu0 0.0
    %303 = vmatprep.subr.mxu0 0.0
    %304 = vmatpush1.msra.mxu0 0.0
    %305 = vmatprep.subr.mxu0 0.0
    %306 = vmatpush1.msra.mxu0 0.0
    %307 = vmatprep.subr.mxu0 0.0
    %308 = vmatpush1.msra.mxu0 0.0
    %309 = vmatprep.subr.mxu0 0.0
    %310 = vmatpush1.msra.mxu0 0.0
    %311 = vmatprep.subr.mxu0 0.0
    %312 = vmatpush1.msra.mxu0 0.0
    %313 = vmatprep.subr.mxu0 0.0
    %314 = vmatpush1.msra.mxu0 0.0
    %315 = vmatprep.subr.mxu0 0.0
    %316 = vmatpush1.msra.mxu0 0.0
    %317 = vmatprep.subr.mxu0 0.0
    %318 = vmatpush1.msra.mxu0 0.0
    %319 = vmatprep.subr.mxu0 0.0
    %320 = vmatpush1.msra.mxu0 0.0
    %321 = vmatprep.subr.mxu0 0.0
    %322 = vmatpush1.msra.mxu0 0.0
    %323 = vmatprep.subr.mxu0 0.0
    %324 = vmatpush1.msra.mxu0 0.0
    %325 = vmatprep.subr.mxu0 0.0
    %326 = vmatpush1.msra.mxu0 0.0
    %327 = vmatprep.subr.mxu0 0.0
    %328 = vmatpush1.msra.mxu0 0.0
    %329 = vmatprep.subr.mxu0 0.0
    %330 = vmatpush1.msra.mxu0 0.0
    %331 = vmatprep.subr.mxu0 0.0
    %332 = vmatpush1.msra.mxu0 0.0
    %333 = vmatprep.subr.mxu0 0.0
    %334 = vmatpush1.msra.mxu0 0.0
    %335 = vmatprep.subr.mxu0 0.0
    %336 = vmatpush1.msra.mxu0 0.0
    %337 = vmatprep.subr.mxu0 0.0
    %338 = vmatpush1.msra.mxu0 0.0
    %339 = vmatprep.subr.mxu0 0.0
    %340 = vmatpush1.msra.mxu0 0.0
    %341 = vmatprep.mubr.f32.mxu0 0.0
    %342 = vmatmul.mubr.f32.gmra.mrb[0].mxu0 %v275
    %v343 = vpop.f32.mrb[0].mxu0
    %v344 = vadd.f32 0.0, %v343
    %v345 = vpop.f32.mrb[0].mxu0
    %346 = vdwg.mxu0
    %v347 = vsel %vm65, %v251, 0
    %349 = vmatprep.subr.mxu0 0.0
    %350 = vmatpush1.msra.mxu0 %v266
    %351 = vmatprep.subr.mxu0 0.0
    %352 = vmatpush1.msra.mxu0 %v267
    %353 = vmatprep.subr.mxu0 0.0
    %354 = vmatpush1.msra.mxu0 %v268
    %355 = vmatprep.subr.mxu0 0.0
    %356 = vmatpush1.msra.mxu0 %v269
    %357 = vmatprep.subr.mxu0 0.0
    %358 = vmatpush1.msra.mxu0 0.0
    %359 = vmatprep.subr.mxu0 0.0
    %360 = vmatpush1.msra.mxu0 0.0
    %361 = vmatprep.subr.mxu0 0.0
    %362 = vmatpush1.msra.mxu0 0.0
    %363 = vmatprep.subr.mxu0 0.0
    %364 = vmatpush1.msra.mxu0 0.0
    %365 = vmatprep.subr.mxu0 0.0
    %366 = vmatpush1.msra.mxu0 0.0
    %367 = vmatprep.subr.mxu0 0.0
    %368 = vmatpush1.msra.mxu0 0.0
    %369 = vmatprep.subr.mxu0 0.0
    %370 = vmatpush1.msra.mxu0 0.0
    %371 = vmatprep.subr.mxu0 0.0
    %372 = vmatpush1.msra.mxu0 0.0
    %373 = vmatprep.subr.mxu0 0.0
    %374 = vmatpush1.msra.mxu0 0.0
    %375 = vmatprep.subr.mxu0 0.0
    %376 = vmatpush1.msra.mxu0 0.0
    %377 = vmatprep.subr.mxu0 0.0
    %378 = vmatpush1.msra.mxu0 0.0
    %379 = vmatprep.subr.mxu0 0.0
    %380 = vmatpush1.msra.mxu0 0.0
    %381 = vmatprep.subr.mxu0 0.0
    %382 = vmatpush1.msra.mxu0 0.0
    %383 = vmatprep.subr.mxu0 0.0
    %384 = vmatpush1.msra.mxu0 0.0
    %385 = vmatprep.subr.mxu0 0.0
    %386 = vmatpush1.msra.mxu0 0.0
    %387 = vmatprep.subr.mxu0 0.0
    %388 = vmatpush1.msra.mxu0 0.0
    %389 = vmatprep.subr.mxu0 0.0
    %390 = vmatpush1.msra.mxu0 0.0
    %391 = vmatprep.subr.mxu0 0.0
    %392 = vmatpush1.msra.mxu0 0.0
    %393 = vmatprep.subr.mxu0 0.0
    %394 = vmatpush1.msra.mxu0 0.0
    %395 = vmatprep.subr.mxu0 0.0
    %396 = vmatpush1.msra.mxu0 0.0
    %397 = vmatprep.subr.mxu0 0.0
    %398 = vmatpush1.msra.mxu0 0.0
    %399 = vmatprep.subr.mxu0 0.0
    %400 = vmatpush1.msra.mxu0 0.0
    %401 = vmatprep.subr.mxu0 0.0
    %402 = vmatpush1.msra.mxu0 0.0
    %403 = vmatprep.subr.mxu0 0.0
    %404 = vmatpush1.msra.mxu0 0.0
    %405 = vmatprep.subr.mxu0 0.0
    %406 = vmatpush1.msra.mxu0 0.0
    %407 = vmatprep.subr.mxu0 0.0
    %408 = vmatpush1.msra.mxu0 0.0
    %409 = vmatprep.subr.mxu0 0.0
    %410 = vmatpush1.msra.mxu0 0.0
    %411 = vmatprep.subr.mxu0 0.0
    %412 = vmatpush1.msra.mxu0 0.0
    %413 = vmatprep.mubr.f32.mxu0 0.0
    %414 = vmatmul.mubr.f32.gmra.mrb[0].mxu0 %v347
    %v415 = vpop.f32.mrb[0].mxu0
    %v416 = vadd.f32 %v344, %v415
    %v417 = vpop.f32.mrb[0].mxu0
    %418 = vdwg.mxu0
    %s419 = scalar_lea.vmem %s3, 1
    %v420 = vld [vmem:[%s419] sm:$0x1]
    %v422 = vlaneseq
    %v423 = vshrl.u32 %v422, 7
    %v424 = vsub.s32 0, %v423
    %v425 = vrot.slane %v420, %v424
    %v427 = vadd.f32 %v416, %v425
    %v428 = vxor.u32 %v427, 2147483648
    %v429 = vmul.f32 %v428, 1.442695
    %v430 = vpow.pop %v429
    %v431 = vadd.f32 %v430, 1.0
    %v432 = vrcp.pop %v431
    %v433 = vmul.f32 1.0, %v432
    %v434 = vtanh.pop %v427
    %436 = vrot.lane.b32.xlu0 %v264, 32
    %v437 = vpop.permute.xlu0 %436
    %v439 = vmul.f32 %v433, %v437
    %441 = vrot.lane.b32.xlu0 %v434, 64
    %v442 = vpop.permute.xlu0 %441
    %v444 = vmul.f32 %v433, %v442
    %446 = vrot.lane.b32.xlu0 %v444, 32
    %v447 = vpop.permute.xlu0 %446
    %v449 = vadd.f32 %v439, %v447
    %v450 = vtanh.pop %v449
    %452 = vrot.lane.b32.xlu0 %v450, 64
    %v453 = vpop.permute.xlu0 %452
    %v455 = vmul.f32 %v433, %v453
    %457 = vrot.lane.b32.xlu0 %v455, 32
    %v458 = vpop.permute.xlu0 %457
    %s460 = scalar_lea.vmem [#allocation8], 4
    %461 = vst.msk [vmem:[%s460] sm:$0x3] %vm253, %v458
    %463 = vrot.lane.b32.xlu0 %v449, 96
    %v464 = vpop.permute.xlu0 %463
    %s466 = scalar_lea.vmem [#allocation8], 6
    %467 = vst.msk [vmem:[%s466] sm:$0x3] %vm253, %v464
    %s468 = scalar_lea.vmem [#allocation2], 8
    %v469 = vld [vmem:[%s468] sm:$0x3]
    %s470 = scalar_lea.vmem [#allocation2], 10
    %v471 = vld [vmem:[%s470] sm:$0x3]
    %s472 = scalar_lea.vmem [#allocation5], 128
    %v473 = vld [vmem:[%s472] sm:$0xff]
    %v474 = vld [vmem:[%s472 + $0x8] sm:$0xff]
    %v475 = vld [vmem:[%s472 + $0x10] sm:$0xff]
    %v476 = vld [vmem:[%s472 + $0x18] sm:$0xff]
    %v477 = vld [vmem:[%s472 + $0x20] sm:$0xff]
    %v478 = vld [vmem:[%s472 + $0x28] sm:$0xff]
    %v479 = vld [vmem:[%s472 + $0x30] sm:$0xff]
    %v480 = vld [vmem:[%s472 + $0x38] sm:$0xff]
    %v482 = vsel %vm65, %v469, 0
    %484 = vmatprep.subr.mxu0 0.0
    %485 = vmatpush1.msra.mxu0 %v477
    %486 = vmatprep.subr.mxu0 0.0
    %487 = vmatpush1.msra.mxu0 %v478
    %488 = vmatprep.subr.mxu0 0.0
    %489 = vmatpush1.msra.mxu0 %v479
    %490 = vmatprep.subr.mxu0 0.0
    %491 = vmatpush1.msra.mxu0 %v480
    %492 = vmatprep.subr.mxu0 0.0
    %493 = vmatpush1.msra.mxu0 0.0
    %494 = vmatprep.subr.mxu0 0.0
    %495 = vmatpush1.msra.mxu0 0.0
    %496 = vmatprep.subr.mxu0 0.0
    %497 = vmatpush1.msra.mxu0 0.0
    %498 = vmatprep.subr.mxu0 0.0
    %499 = vmatpush1.msra.mxu0 0.0
    %500 = vmatprep.subr.mxu0 0.0
    %501 = vmatpush1.msra.mxu0 0.0
    %502 = vmatprep.subr.mxu0 0.0
    %503 = vmatpush1.msra.mxu0 0.0
    %504 = vmatprep.subr.mxu0 0.0
    %505 = vmatpush1.msra.mxu0 0.0
    %506 = vmatprep.subr.mxu0 0.0
    %507 = vmatpush1.msra.mxu0 0.0
    %508 = vmatprep.subr.mxu0 0.0
    %509 = vmatpush1.msra.mxu0 0.0
    %510 = vmatprep.subr.mxu0 0.0
    %511 = vmatpush1.msra.mxu0 0.0
    %512 = vmatprep.subr.mxu0 0.0
    %513 = vmatpush1.msra.mxu0 0.0
    %514 = vmatprep.subr.mxu0 0.0
    %515 = vmatpush1.msra.mxu0 0.0
    %516 = vmatprep.subr.mxu0 0.0
    %517 = vmatpush1.msra.mxu0 0.0
    %518 = vmatprep.subr.mxu0 0.0
    %519 = vmatpush1.msra.mxu0 0.0
    %520 = vmatprep.subr.mxu0 0.0
    %521 = vmatpush1.msra.mxu0 0.0
    %522 = vmatprep.subr.mxu0 0.0
    %523 = vmatpush1.msra.mxu0 0.0
    %524 = vmatprep.subr.mxu0 0.0
    %525 = vmatpush1.msra.mxu0 0.0
    %526 = vmatprep.subr.mxu0 0.0
    %527 = vmatpush1.msra.mxu0 0.0
    %528 = vmatprep.subr.mxu0 0.0
    %529 = vmatpush1.msra.mxu0 0.0
    %530 = vmatprep.subr.mxu0 0.0
    %531 = vmatpush1.msra.mxu0 0.0
    %532 = vmatprep.subr.mxu0 0.0
    %533 = vmatpush1.msra.mxu0 0.0
    %534 = vmatprep.subr.mxu0 0.0
    %535 = vmatpush1.msra.mxu0 0.0
    %536 = vmatprep.subr.mxu0 0.0
    %537 = vmatpush1.msra.mxu0 0.0
    %538 = vmatprep.subr.mxu0 0.0
    %539 = vmatpush1.msra.mxu0 0.0
    %540 = vmatprep.subr.mxu0 0.0
    %541 = vmatpush1.msra.mxu0 0.0
    %542 = vmatprep.subr.mxu0 0.0
    %543 = vmatpush1.msra.mxu0 0.0
    %544 = vmatprep.subr.mxu0 0.0
    %545 = vmatpush1.msra.mxu0 0.0
    %546 = vmatprep.subr.mxu0 0.0
    %547 = vmatpush1.msra.mxu0 0.0
    %548 = vmatprep.mubr.f32.mxu0 0.0
    %549 = vmatmul.mubr.f32.gmra.mrb[0].mxu0 %v482
    %v550 = vpop.f32.mrb[0].mxu0
    %v551 = vadd.f32 0.0, %v550
    %v552 = vpop.f32.mrb[0].mxu0
    %553 = vdwg.mxu0
    %v554 = vsel %vm65, %v458, 0
    %556 = vmatprep.subr.mxu0 0.0
    %557 = vmatpush1.msra.mxu0 %v473
    %558 = vmatprep.subr.mxu0 0.0
    %559 = vmatpush1.msra.mxu0 %v474
    %560 = vmatprep.subr.mxu0 0.0
    %561 = vmatpush1.msra.mxu0 %v475
    %562 = vmatprep.subr.mxu0 0.0
    %563 = vmatpush1.msra.mxu0 %v476
    %564 = vmatprep.subr.mxu0 0.0
    %565 = vmatpush1.msra.mxu0 0.0
    %566 = vmatprep.subr.mxu0 0.0
    %567 = vmatpush1.msra.mxu0 0.0
    %568 = vmatprep.subr.mxu0 0.0
    %569 = vmatpush1.msra.mxu0 0.0
    %570 = vmatprep.subr.mxu0 0.0
    %571 = vmatpush1.msra.mxu0 0.0
    %572 = vmatprep.subr.mxu0 0.0
    %573 = vmatpush1.msra.mxu0 0.0
    %574 = vmatprep.subr.mxu0 0.0
    %575 = vmatpush1.msra.mxu0 0.0
    %576 = vmatprep.subr.mxu0 0.0
    %577 = vmatpush1.msra.mxu0 0.0
    %578 = vmatprep.subr.mxu0 0.0
    %579 = vmatpush1.msra.mxu0 0.0
    %580 = vmatprep.subr.mxu0 0.0
    %581 = vmatpush1.msra.mxu0 0.0
    %582 = vmatprep.subr.mxu0 0.0
    %583 = vmatpush1.msra.mxu0 0.0
    %584 = vmatprep.subr.mxu0 0.0
    %585 = vmatpush1.msra.mxu0 0.0
    %586 = vmatprep.subr.mxu0 0.0
    %587 = vmatpush1.msra.mxu0 0.0
    %588 = vmatprep.subr.mxu0 0.0
    %589 = vmatpush1.msra.mxu0 0.0
    %590 = vmatprep.subr.mxu0 0.0
    %591 = vmatpush1.msra.mxu0 0.0
    %592 = vmatprep.subr.mxu0 0.0
    %593 = vmatpush1.msra.mxu0 0.0
    %594 = vmatprep.subr.mxu0 0.0
    %595 = vmatpush1.msra.mxu0 0.0
    %596 = vmatprep.subr.mxu0 0.0
    %597 = vmatpush1.msra.mxu0 0.0
    %598 = vmatprep.subr.mxu0 0.0
    %599 = vmatpush1.msra.mxu0 0.0
    %600 = vmatprep.subr.mxu0 0.0
    %601 = vmatpush1.msra.mxu0 0.0
    %602 = vmatprep.subr.mxu0 0.0
    %603 = vmatpush1.msra.mxu0 0.0
    %604 = vmatprep.subr.mxu0 0.0
    %605 = vmatpush1.msra.mxu0 0.0
    %606 = vmatprep.subr.mxu0 0.0
    %607 = vmatpush1.msra.mxu0 0.0
    %608 = vmatprep.subr.mxu0 0.0
    %609 = vmatpush1.msra.mxu0 0.0
    %610 = vmatprep.subr.mxu0 0.0
    %611 = vmatpush1.msra.mxu0 0.0
    %612 = vmatprep.subr.mxu0 0.0
    %613 = vmatpush1.msra.mxu0 0.0
    %614 = vmatprep.subr.mxu0 0.0
    %615 = vmatpush1.msra.mxu0 0.0
    %616 = vmatprep.subr.mxu0 0.0
    %617 = vmatpush1.msra.mxu0 0.0
    %618 = vmatprep.subr.mxu0 0.0
    %619 = vmatpush1.msra.mxu0 0.0
    %620 = vmatprep.mubr.f32.mxu0 0.0
    %621 = vmatmul.mubr.f32.gmra.mrb[0].mxu0 %v554
    %v622 = vpop.f32.mrb[0].mxu0
    %v623 = vadd.f32 %v551, %v622
    %v624 = vpop.f32.mrb[0].mxu0
    %625 = vdwg.mxu0
    %s626 = scalar_lea.vmem %s3, 2
    %v627 = vld [vmem:[%s626] sm:$0x1]
    %v629 = vlaneseq
    %v630 = vshrl.u32 %v629, 7
    %v631 = vsub.s32 0, %v630
    %v632 = vrot.slane %v627, %v631
    %v634 = vadd.f32 %v623, %v632
    %v635 = vxor.u32 %v634, 2147483648
    %v636 = vmul.f32 %v635, 1.442695
    %v637 = vpow.pop %v636
    %v638 = vadd.f32 %v637, 1.0
    %v639 = vrcp.pop %v638
    %v640 = vmul.f32 1.0, %v639
    %v641 = vtanh.pop %v634
    %643 = vrot.lane.b32.xlu0 %v471, 32
    %v644 = vpop.permute.xlu0 %643
    %v646 = vmul.f32 %v640, %v644
    %648 = vrot.lane.b32.xlu0 %v641, 64
    %v649 = vpop.permute.xlu0 %648
    %v651 = vmul.f32 %v640, %v649
    %653 = vrot.lane.b32.xlu0 %v651, 32
    %v654 = vpop.permute.xlu0 %653
    %v656 = vadd.f32 %v646, %v654
    %v657 = vtanh.pop %v656
    %659 = vrot.lane.b32.xlu0 %v657, 64
    %v660 = vpop.permute.xlu0 %659
    %v662 = vmul.f32 %v640, %v660
    %664 = vrot.lane.b32.xlu0 %v662, 32
    %v665 = vpop.permute.xlu0 %664
    %s667 = scalar_lea.vmem [#allocation8], 8
    %668 = vst.msk [vmem:[%s667] sm:$0x3] %vm253, %v665
    %670 = vrot.lane.b32.xlu0 %v656, 96
    %v671 = vpop.permute.xlu0 %670
    %s673 = scalar_lea.vmem [#allocation8], 10
    %674 = vst.msk [vmem:[%s673] sm:$0x3] %vm253, %v671
    %v675 = vld [vmem:[%s4] sm:$0xff]
    %v676 = vld [vmem:[%s4 + $0x8] sm:$0xff]
    %v677 = vld [vmem:[%s4 + $0x10] sm:$0xff]
    %v678 = vld [vmem:[%s4 + $0x18] sm:$0xff]
    %v679 = vld [vmem:[%s5] sm:$0x1]
    %v681 = vlaneseq
    %v682 = vshrl.u32 %v681, 7
    %v683 = vsub.s32 0, %v682
    %v684 = vrot.slane %v679, %v683
    %v686 = vsel %vm65, %v665, 0
    %688 = vmatprep.subr.mxu0 0.0
    %689 = vmatpush1.msra.mxu0 %v675
    %690 = vmatprep.subr.mxu0 0.0
    %691 = vmatpush1.msra.mxu0 %v676
    %692 = vmatprep.subr.mxu0 0.0
    %693 = vmatpush1.msra.mxu0 %v677
    %694 = vmatprep.subr.mxu0 0.0
    %695 = vmatpush1.msra.mxu0 %v678
    %696 = vmatprep.subr.mxu0 0.0
    %697 = vmatpush1.msra.mxu0 0.0
    %698 = vmatprep.subr.mxu0 0.0
    %699 = vmatpush1.msra.mxu0 0.0
    %700 = vmatprep.subr.mxu0 0.0
    %701 = vmatpush1.msra.mxu0 0.0
    %702 = vmatprep.subr.mxu0 0.0
    %703 = vmatpush1.msra.mxu0 0.0
    %704 = vmatprep.subr.mxu0 0.0
    %705 = vmatpush1.msra.mxu0 0.0
    %706 = vmatprep.subr.mxu0 0.0
    %707 = vmatpush1.msra.mxu0 0.0
    %708 = vmatprep.subr.mxu0 0.0
    %709 = vmatpush1.msra.mxu0 0.0
    %710 = vmatprep.subr.mxu0 0.0
    %711 = vmatpush1.msra.mxu0 0.0
    %712 = vmatprep.subr.mxu0 0.0
    %713 = vmatpush1.msra.mxu0 0.0
    %714 = vmatprep.subr.mxu0 0.0
    %715 = vmatpush1.msra.mxu0 0.0
    %716 = vmatprep.subr.mxu0 0.0
    %717 = vmatpush1.msra.mxu0 0.0
    %718 = vmatprep.subr.mxu0 0.0
    %719 = vmatpush1.msra.mxu0 0.0
    %720 = vmatprep.subr.mxu0 0.0
    %721 = vmatpush1.msra.mxu0 0.0
    %722 = vmatprep.subr.mxu0 0.0
    %723 = vmatpush1.msra.mxu0 0.0
    %724 = vmatprep.subr.mxu0 0.0
    %725 = vmatpush1.msra.mxu0 0.0
    %726 = vmatprep.subr.mxu0 0.0
    %727 = vmatpush1.msra.mxu0 0.0
    %728 = vmatprep.subr.mxu0 0.0
    %729 = vmatpush1.msra.mxu0 0.0
    %730 = vmatprep.subr.mxu0 0.0
    %731 = vmatpush1.msra.mxu0 0.0
    %732 = vmatprep.subr.mxu0 0.0
    %733 = vmatpush1.msra.mxu0 0.0
    %734 = vmatprep.subr.mxu0 0.0
    %735 = vmatpush1.msra.mxu0 0.0
    %736 = vmatprep.subr.mxu0 0.0
    %737 = vmatpush1.msra.mxu0 0.0
    %738 = vmatprep.subr.mxu0 0.0
    %739 = vmatpush1.msra.mxu0 0.0
    %740 = vmatprep.subr.mxu0 0.0
    %741 = vmatpush1.msra.mxu0 0.0
    %742 = vmatprep.subr.mxu0 0.0
    %743 = vmatpush1.msra.mxu0 0.0
    %744 = vmatprep.subr.mxu0 0.0
    %745 = vmatpush1.msra.mxu0 0.0
    %746 = vmatprep.subr.mxu0 0.0
    %747 = vmatpush1.msra.mxu0 0.0
    %748 = vmatprep.subr.mxu0 0.0
    %749 = vmatpush1.msra.mxu0 0.0
    %750 = vmatprep.subr.mxu0 0.0
    %751 = vmatpush1.msra.mxu0 0.0
    %752 = vmatprep.mubr.f32.mxu0 0.0
    %753 = vmatmul.mubr.f32.gmra.mrb[0].mxu0 %v686
    %v754 = vpop.f32.mrb[0].mxu0
    %v755 = vadd.f32 %v684, %v754
    %v756 = vpop.f32.mrb[0].mxu0
    %757 = vdwg.mxu0
    %vm758 = vcmask 58368
    %v759 = vsel %vm758, %v755, -inf
    %760 = vmax.xlane.f32.xlu0 %v759
    %v761 = vpop.xlane.xlu0 %760
    %v762 = vsub.f32 %v755, %v761
    %v763 = vmul.f32 %v762, 1.442695
    %v764 = vpow.pop %v763
    %v765 = vsel %vm758, %v764, 0.0
    %766 = vadd.xlane.f32.xlu0 %v765
    %v767 = vpop.xlane.xlu0 %766
    %v768 = vrcp.pop %v767
    %v769 = vmul.f32 %v764, %v768
    %770 = vst.msk [vmem:[#allocation7] sm:$0x3] %vm758, %v769
    // Predicated region
    $region34: #{policy_lstm_forward.1} parent=1 // pred_check
      _
    $region35: #{policy_lstm_forward.1} parent=1 // pred_check_branch
      %772 = sbr.rel (0) target = $region37
    $region36: #{policy_lstm_forward.1} parent=1 // pred_region
      %s774 = ssub.s32 32, 32
      %775 = vsyncadd [#allocation4], %s774
      %s777 = sshll.u32 [#allocation7], 4
      %s778 = int_to_ptr.vmem [resolvable:$true] %s777
      %780 = dma.vmem_to_hbm [thread:$0]  %s778, 32, %s6, [#allocation4]
    $region37: #{policy_lstm_forward.1} parent=1 // pred_fallthru
      _
    // Predicated region
    $region38: #{policy_lstm_forward.1} parent=1 // pred_check
      _
    $region39: #{policy_lstm_forward.1} parent=1 // pred_check_branch
      %782 = sbr.rel (0) target = $region41
    $region40: #{policy_lstm_forward.1} parent=1 // pred_region
      %s784 = ssub.s32 192, 192
      %785 = vsyncadd [#allocation9], %s784
      %s786 = sshll.u32 [#allocation8], 4
      %s787 = int_to_ptr.vmem [resolvable:$true] %s786
      %792 = dma.vmem_to_hbm [thread:$0]  %s787, 192, %s7, [#allocation9], 32, 32, 2
    $region41: #{policy_lstm_forward.1} parent=1 // pred_fallthru
      _
    // Predicated region
    $region42: #{policy_lstm_forward.1} parent=1 // pred_check
      _
    $region43: #{policy_lstm_forward.1} parent=1 // pred_check_branch
      %794 = sbr.rel (0) target = $region45
    $region44: #{policy_lstm_forward.1} parent=1 // pred_region
      %795 = dma.done [#allocation4], 32
    $region45: #{policy_lstm_forward.1} parent=1 // pred_fallthru
      _
    // Predicated region
    $region46: #{policy_lstm_forward.1} parent=1 // pred_check
      _
    $region47: #{policy_lstm_forward.1} parent=1 // pred_check_branch
      %797 = sbr.rel (0) target = $region49
    $region48: #{policy_lstm_forward.1} parent=1 // pred_region
      %798 = dma.done [#allocation9], 192
    $region49: #{policy_lstm_forward.1} parent=1 // pred_fallthru
      _
    %799 = vsyncpa [#allocation3], 1
    %800 = vsyncpa [#allocation6], 1
    %801 = vsyncpa [#allocation4], 1
    %802 = vsyncpa [#allocation9], 1

</llo_original>
